<compile_context>
chip_gen: v6e
topology: v6e:2x2x1
jax: 0.10.0
libtpu: 0.0.40
codegen_flags: <defaults>
</compile_context>

<pallas_src>
import jax
import jax.numpy as jnp
from jax.experimental import pallas as pl
from jax.experimental.pallas import tpu as pltpu


def _round_up(x, m):
    return ((x + m - 1) // m) * m


def coupling_kernel(z_ref, mask_ref, w1_ref, b1_ref, w2_ref, b2_ref,
                    x_ref, logdet_ref):
    """One batch tile of the affine-coupling forward.

    z_ref    : (TB, DP)        input tile
    mask_ref : (1, DP)         binary mask (pad columns == 1)
    w1_ref   : (DP, 2*HP)      fused first layers  [w1s | w1t]
    b1_ref   : (1, 2*HP)
    w2_ref   : (2*HP, 2*DP)    fused second layers block_diag(w2s, w2t)
    b2_ref   : (1, 2*DP)
    x_ref    : (TB, DP)        output tile
    logdet   : (TB, 1)
    """
    dp = z_ref.shape[-1]

    z = z_ref[...].astype(jnp.float32)
    m = mask_ref[...].astype(jnp.float32)
    one_minus_m = 1.0 - m

    z_masked = z * m

    # Fused first Linear of both nets (single MXU pass) + shared tanh (EUP).
    h = jnp.tanh(
        jnp.dot(z_masked, w1_ref[...], preferred_element_type=jnp.float32)
        + b1_ref[...])

    # Fused second Linear (block-diagonal weights) -> [s_pre | t_pre].
    st = (jnp.dot(h, w2_ref[...], preferred_element_type=jnp.float32)
          + b2_ref[...])

    # Static, 128-aligned column slices (no relayout).
    s = jnp.tanh(st[:, :dp]) * one_minus_m     # scale net ends with tanh
    t = st[:, dp:] * one_minus_m               # translation net does not

    # Binary mask:  z_masked + (1-m)*(z*exp(s)+t) == z*exp(s) + t
    # (exp(s) == 1 and t == 0 wherever m == 1).
    x = z * jnp.exp(s) + t
    x_ref[...] = x.astype(x_ref.dtype)

    # log|det J| = sum_j s_j ; pad columns contribute 0 (mask==1 there -> s==0).
    logdet_ref[...] = jnp.sum(s, axis=1, keepdims=True).astype(logdet_ref.dtype)


def masked_coupling_forward(z, mask, params, *, tile_b=2048):
    """z: (B, D), mask: (D,) binary, params: dict of the two 2-layer MLPs.

    Returns (x, log_det_J) with x: (B, D), log_det_J: (B,).
    """
    B, D = z.shape
    H = params["w1s"].shape[1]

    DP = _round_up(D, 128)          # lane-dense feature dim
    HP = _round_up(H, 64)           # so 2*HP is a multiple of 128

    f32 = jnp.float32
    # --- pack + zero-pad parameters (trace-time; fused layouts) ---
    w1 = jnp.zeros((DP, 2 * HP), f32)
    w1 = w1.at[:D, :H].set(params["w1s"].astype(f32))
    w1 = w1.at[:D, HP:HP + H].set(params["w1t"].astype(f32))
    b1 = jnp.zeros((1, 2 * HP), f32)
    b1 = b1.at[0, :H].set(params["b1s"].astype(f32))
    b1 = b1.at[0, HP:HP + H].set(params["b1t"].astype(f32))

    w2 = jnp.zeros((2 * HP, 2 * DP), f32)
    w2 = w2.at[:H, :D].set(params["w2s"].astype(f32))
    w2 = w2.at[HP:HP + H, DP:DP + D].set(params["w2t"].astype(f32))
    b2 = jnp.zeros((1, 2 * DP), f32)
    b2 = b2.at[0, :D].set(params["b2s"].astype(f32))
    b2 = b2.at[0, DP:DP + D].set(params["b2t"].astype(f32))

    # Pad columns get mask = 1 => (1 - m) = 0 => identity on pad lanes, s = 0 there.
    mask_p = jnp.ones((1, DP), f32).at[0, :D].set(mask.astype(f32))

    # --- batch tiling / padding ---
    TILE_B = int(min(tile_b, _round_up(B, 8)))
    TILE_B = _round_up(TILE_B, 8)
    BP = _round_up(B, TILE_B)
    if BP != B or DP != D:
        z_p = jnp.zeros((BP, DP), z.dtype).at[:B, :D].set(z)
    else:
        z_p = z

    grid = (BP // TILE_B,)

    # VMEM budget: double-buffered z/x/logdet blocks + resident (also 2x-buffered)
    # weights/mask, plus headroom for in-kernel temporaries (h, st, exp).
    bytes_step = 4 * (2 * TILE_B * DP + TILE_B)
    bytes_resident = 4 * (DP * 2 * HP + 2 * HP + 2 * HP * 2 * DP + 2 * DP + DP)
    bytes_temps = 4 * TILE_B * (2 * HP + 2 * DP + 2 * DP)
    vmem_limit = int(2 * (bytes_step + bytes_resident) + bytes_temps + (4 << 20))
    vmem_limit = min(vmem_limit, 48 << 20)   # stay under v7x's 64 MiB physical VMEM

    batch_spec = pl.BlockSpec((TILE_B, DP), lambda i: (i, 0))
    const = lambda shape: pl.BlockSpec(shape, lambda i: (0, 0))

    x_p, logdet_p = pl.pallas_call(
        coupling_kernel,
        grid=grid,
        in_specs=[
            batch_spec,                      # z
            const((1, DP)),                  # mask
            const((DP, 2 * HP)),             # fused W1
            const((1, 2 * HP)),              # fused b1
            const((2 * HP, 2 * DP)),         # fused W2
            const((1, 2 * DP)),              # fused b2
        ],
        out_specs=(
            batch_spec,                      # x
            pl.BlockSpec((TILE_B, 1), lambda i: (i, 0)),   # log-det
        ),
        out_shape=(
            jax.ShapeDtypeStruct((BP, DP), z.dtype),
            jax.ShapeDtypeStruct((BP, 1), jnp.float32),
        ),
        compiler_params=pltpu.CompilerParams(
            dimension_semantics=("parallel",),
            vmem_limit_bytes=vmem_limit,
        ),
    )(z_p, mask_p, w1, b1, w2, b2)

    return x_p[:B, :D], logdet_p[:B, 0]


def _reference_forward(z, mask, params):
    """Pure-JAX reference mirroring the PyTorch module semantics."""
    m = mask[None, :]
    zm = z * m
    h_s = jnp.tanh(zm @ params["w1s"] + params["b1s"])
    s = jnp.tanh(h_s @ params["w2s"] + params["b2s"]) * (1.0 - m)
    h_t = jnp.tanh(zm @ params["w1t"] + params["b1t"])
    t = (h_t @ params["w2t"] + params["b2t"]) * (1.0 - m)
    x = zm + (1.0 - m) * (z * jnp.exp(s) + t)
    return x, jnp.sum(s, axis=1)


def _init_params(key, D, H):
    ks = jax.random.split(key, 8)
    sc = 0.1
    return {
        "w1s": sc * jax.random.normal(ks[0], (D, H), jnp.float32),
        "b1s": sc * jax.random.normal(ks[1], (H,), jnp.float32),
        "w2s": sc * jax.random.normal(ks[2], (H, D), jnp.float32),
        "b2s": sc * jax.random.normal(ks[3], (D,), jnp.float32),
        "w1t": sc * jax.random.normal(ks[4], (D, H), jnp.float32),
        "b1t": sc * jax.random.normal(ks[5], (H,), jnp.float32),
        "w2t": sc * jax.random.normal(ks[6], (H, D), jnp.float32),
        "b2t": sc * jax.random.normal(ks[7], (D,), jnp.float32),
    }


if __name__ == "__main__":
    D, H = 64, 32
    key = jax.random.PRNGKey(0)
    k_z1, k_z2, k_p = jax.random.split(key, 3)
    mask = (jnp.arange(D) % 2).astype(jnp.float32)   # alternating binary mask
    params = _init_params(k_p, D, H)

    # Test 1: small batch (single grid step).
    B1 = 8
    z1 = jax.random.normal(k_z1, (B1, D), jnp.float32)
    x1, ld1 = masked_coupling_forward(z1, mask, params)
    jax.block_until_ready((x1, ld1))
    x1_ref, ld1_ref = _reference_forward(z1, mask, params)
    assert x1.shape == (B1, D) and ld1.shape == (B1,)
    assert jnp.allclose(x1, x1_ref, atol=2e-5, rtol=1e-5)
    assert jnp.allclose(ld1, ld1_ref, atol=2e-5, rtol=1e-5)

    # Test 2: ragged batch with an explicit small tile -> multi-step pipelined grid.
    B2 = 300
    z2 = jax.random.normal(k_z2, (B2, D), jnp.float32)
    x2, ld2 = masked_coupling_forward(z2, mask, params, tile_b=128)
    jax.block_until_ready((x2, ld2))
    x2_ref, ld2_ref = _reference_forward(z2, mask, params)
    assert x2.shape == (B2, D) and ld2.shape == (B2,)
    assert jnp.allclose(x2, x2_ref, atol=2e-5, rtol=1e-5)
    assert jnp.allclose(ld2, ld2_ref, atol=2e-5, rtol=1e-5)

    print("KERNEL_OK")
</pallas_src>

<mosaic_0001>
module attributes {stable_mosaic.version = 11 : i64} {
  func.func @coupling_kernel(%arg0: i32, %arg1: memref<8x128xf32, #tpu.memory_space<vmem>>, %arg2: memref<1x128xf32, #tpu.memory_space<vmem>>, %arg3: memref<128x128xf32, #tpu.memory_space<vmem>>, %arg4: memref<1x128xf32, #tpu.memory_space<vmem>>, %arg5: memref<128x256xf32, #tpu.memory_space<vmem>>, %arg6: memref<1x256xf32, #tpu.memory_space<vmem>>, %arg7: memref<8x128xf32, #tpu.memory_space<vmem>>, %arg8: memref<8x1xf32, #tpu.memory_space<vmem>>) attributes {dimension_semantics = [#tpu.dimension_semantics<parallel>], iteration_bounds = array<i64: 1>, scalar_prefetch = 0 : i64, scratch_operands = 0 : i64, tpu.core_type = #tpu.core_type<tc>, window_params = [{transform_indices = @transform_0, window_bounds = array<i64: 8, 128>}, {pipeline_mode = #tpu.pipeline_mode<synchronous>, transform_indices = @transform_1, window_bounds = array<i64: 1, 128>}, {pipeline_mode = #tpu.pipeline_mode<synchronous>, transform_indices = @transform_2, window_bounds = array<i64: 128, 128>}, {pipeline_mode = #tpu.pipeline_mode<synchronous>, transform_indices = @transform_3, window_bounds = array<i64: 1, 128>}, {pipeline_mode = #tpu.pipeline_mode<synchronous>, transform_indices = @transform_4, window_bounds = array<i64: 128, 256>}, {pipeline_mode = #tpu.pipeline_mode<synchronous>, transform_indices = @transform_5, window_bounds = array<i64: 1, 256>}, {transform_indices = @transform_6, window_bounds = array<i64: 8, 128>}, {transform_indices = @transform_7, window_bounds = array<i64: 8, 1>}]} {
    %c0 = arith.constant 0 : index
    %c0_0 = arith.constant 0 : index
    %0 = vector.load %arg1[%c0, %c0_0] : memref<8x128xf32, #tpu.memory_space<vmem>>, vector<8x128xf32>
    %c0_1 = arith.constant 0 : index
    %c0_2 = arith.constant 0 : index
    %1 = vector.load %arg2[%c0_1, %c0_2] : memref<1x128xf32, #tpu.memory_space<vmem>>, vector<1x128xf32>
    %cst = arith.constant 1.000000e+00 : f32
    %2 = vector.broadcast %cst : f32 to vector<1x128xf32>
    %3 = arith.subf %2, %1 : vector<1x128xf32>
    %4 = vector.broadcast %1 : vector<1x128xf32> to vector<8x128xf32>
    %5 = arith.mulf %0, %4 : vector<8x128xf32>
    %c0_3 = arith.constant 0 : index
    %c0_4 = arith.constant 0 : index
    %6 = vector.load %arg3[%c0_3, %c0_4] : memref<128x128xf32, #tpu.memory_space<vmem>>, vector<128x128xf32>
    %cst_5 = arith.constant dense<0.000000e+00> : vector<8x128xf32>
    %7 = tpu.matmul %5, %6, %cst_5 {dimension_numbers = #tpu.dot_dimension_numbers<[1], [0], [0], [1], [0, 0, 1, 1], [], []>} : vector<8x128xf32>, vector<128x128xf32>, vector<8x128xf32> -> vector<8x128xf32>
    %c0_6 = arith.constant 0 : index
    %c0_7 = arith.constant 0 : index
    %8 = vector.load %arg4[%c0_6, %c0_7] : memref<1x128xf32, #tpu.memory_space<vmem>>, vector<1x128xf32>
    %9 = vector.broadcast %8 : vector<1x128xf32> to vector<8x128xf32>
    %10 = arith.addf %7, %9 : vector<8x128xf32>
    %11 = math.tanh %10 : vector<8x128xf32>
    %c0_8 = arith.constant 0 : index
    %c0_9 = arith.constant 0 : index
    %12 = vector.load %arg5[%c0_8, %c0_9] : memref<128x256xf32, #tpu.memory_space<vmem>>, vector<128x256xf32>
    %cst_10 = arith.constant dense<0.000000e+00> : vector<8x256xf32>
    %13 = tpu.matmul %11, %12, %cst_10 {dimension_numbers = #tpu.dot_dimension_numbers<[1], [0], [0], [1], [0, 0, 1, 1], [], []>} : vector<8x128xf32>, vector<128x256xf32>, vector<8x256xf32> -> vector<8x256xf32>
    %c0_11 = arith.constant 0 : index
    %c0_12 = arith.constant 0 : index
    %14 = vector.load %arg6[%c0_11, %c0_12] : memref<1x256xf32, #tpu.memory_space<vmem>>, vector<1x256xf32>
    %15 = vector.broadcast %14 : vector<1x256xf32> to vector<8x256xf32>
    %16 = arith.addf %13, %15 : vector<8x256xf32>
    %17 = vector.extract_strided_slice %16 {offsets = [0, 0], sizes = [8, 128], strides = [1, 1]} : vector<8x256xf32> to vector<8x128xf32>
    %18 = math.tanh %17 : vector<8x128xf32>
    %19 = vector.broadcast %3 : vector<1x128xf32> to vector<8x128xf32>
    %20 = arith.mulf %18, %19 : vector<8x128xf32>
    %21 = vector.extract_strided_slice %16 {offsets = [0, 128], sizes = [8, 128], strides = [1, 1]} : vector<8x256xf32> to vector<8x128xf32>
    %22 = vector.broadcast %3 : vector<1x128xf32> to vector<8x128xf32>
    %23 = arith.mulf %21, %22 : vector<8x128xf32>
    %24 = math.exp %20 : vector<8x128xf32>
    %25 = arith.mulf %0, %24 : vector<8x128xf32>
    %26 = arith.addf %25, %23 : vector<8x128xf32>
    %c0_13 = arith.constant 0 : index
    %c0_14 = arith.constant 0 : index
    %27 = vector.load %arg7[%c0_13, %c0_14] : memref<8x128xf32, #tpu.memory_space<vmem>>, vector<8x128xf32>
    tpu.vector_store %arg7[%c0_13, %c0_14], %26 {strides = array<i32>} : memref<8x128xf32, #tpu.memory_space<vmem>>, vector<8x128xf32>,
    %cst_15 = arith.constant dense<0.000000e+00> : vector<8xf32>
    %28 = vector.multi_reduction <add>, %20, %cst_15 [1] : vector<8x128xf32> to vector<8xf32>
    %29 = vector.shape_cast %28 : vector<8xf32> to vector<8x1xf32>
    %c0_16 = arith.constant 0 : index
    %c0_17 = arith.constant 0 : index
    %30 = vector.load %arg8[%c0_16, %c0_17] : memref<8x1xf32, #tpu.memory_space<vmem>>, vector<8x1xf32>
    tpu.vector_store %arg8[%c0_16, %c0_17], %29 {strides = array<i32>} : memref<8x1xf32, #tpu.memory_space<vmem>>, vector<8x1xf32>,
    return
  }
  func.func @transform_0(%arg0: i32) -> (i32, i32) {
    %c0_i32 = arith.constant 0 : i32
    %c0_i32_0 = arith.constant 0 : i32
    return %arg0, %c0_i32 : i32, i32
  }
  func.func @transform_1(%arg0: i32) -> (i32, i32) {
    %c0_i32 = arith.constant 0 : i32
    %c0_i32_0 = arith.constant 0 : i32
    %c0_i32_1 = arith.constant 0 : i32
    return %c0_i32, %c0_i32_0 : i32, i32
  }
  func.func @transform_2(%arg0: i32) -> (i32, i32) {
    %c0_i32 = arith.constant 0 : i32
    %c0_i32_0 = arith.constant 0 : i32
    %c0_i32_1 = arith.constant 0 : i32
    return %c0_i32, %c0_i32_0 : i32, i32
  }
  func.func @transform_3(%arg0: i32) -> (i32, i32) {
    %c0_i32 = arith.constant 0 : i32
    %c0_i32_0 = arith.constant 0 : i32
    %c0_i32_1 = arith.constant 0 : i32
    return %c0_i32, %c0_i32_0 : i32, i32
  }
  func.func @transform_4(%arg0: i32) -> (i32, i32) {
    %c0_i32 = arith.constant 0 : i32
    %c0_i32_0 = arith.constant 0 : i32
    %c0_i32_1 = arith.constant 0 : i32
    return %c0_i32, %c0_i32_0 : i32, i32
  }
  func.func @transform_5(%arg0: i32) -> (i32, i32) {
    %c0_i32 = arith.constant 0 : i32
    %c0_i32_0 = arith.constant 0 : i32
    %c0_i32_1 = arith.constant 0 : i32
    return %c0_i32, %c0_i32_0 : i32, i32
  }
  func.func @transform_6(%arg0: i32) -> (i32, i32) {
    %c0_i32 = arith.constant 0 : i32
    %c0_i32_0 = arith.constant 0 : i32
    return %arg0, %c0_i32 : i32, i32
  }
  func.func @transform_7(%arg0: i32) -> (i32, i32) {
    %c0_i32 = arith.constant 0 : i32
    %c0_i32_0 = arith.constant 0 : i32
    return %arg0, %c0_i32 : i32, i32
  }
}

</mosaic_0001>

<llo_original>
// kernel: tpu_custom_call.1
$region0: #{tpu_custom_call.1}
  #allocation0 [shape = 'u32[]', space=smem, size = 0x4, offset = 0x4, fixed_abs, tag = 'smem constant byte address 0x4 - core index']
  #allocation1 [shape = 'u32[144,128]{1,0:T(1,128)}', space=vmem, size = 0x12000, scoped, tag = 'internal scratch']
  %s0 = inlined_call_operand.hbm [shape: f32[8,128], index: 0, kind: input, shape index: {}]
  %s1 = inlined_call_operand.vmem [shape: f32[1,128], index: 1, kind: input, shape index: {}]
  %s2 = inlined_call_operand.hbm [shape: f32[128,128], index: 2, kind: input, shape index: {}]
  %s3 = inlined_call_operand.vmem [shape: f32[1,128], index: 3, kind: input, shape index: {}]
  %s4 = inlined_call_operand.hbm [shape: f32[128,256], index: 4, kind: input, shape index: {}]
  %s5 = inlined_call_operand.vmem [shape: f32[1,256], index: 5, kind: input, shape index: {}]
  %s6 = inlined_call_operand.hbm [shape: f32[8,128], index: 6, kind: output, shape index: {0}]
  %s7 = inlined_call_operand.vmem [shape: f32[8,1], index: 7, kind: output, shape index: {1}]
  %8 = xla_tuple %s6, %s7
  %s9 = sld [smem:[#allocation0]]
  $region54: #{tpu_custom_call.1} parent=0
    _
  %s11 = ssub.s32 1, %s9
  %s12 = scalar_select 0, %s11, %s9
  $region1: #{tpu_custom_call.1} parent=0
    #allocation2 [shape = 'u8[4096]{0}', space=vmem, size = 0x1000, scoped, tag = 'input window, operand 0, single buffered']
    #allocation3 [shape = 's32[1]{0}', space=sflag, size = 0x4, scoped, tag = 'scoped memory for tpu_custom_call.1']
    #allocation4 [shape = 's32[1]{0}', space=sflag, size = 0x4, scoped, tag = 'scoped memory for tpu_custom_call.1']
    #allocation5 [shape = 'u8[65536]{0}', space=vmem, size = 0x10000, scoped, tag = 'input window, operand 2, single buffered']
    #allocation6 [shape = 's32[1]{0}', space=sflag, size = 0x4, scoped, tag = 'scoped memory for tpu_custom_call.1']
    #allocation7 [shape = 'u8[131072]{0}', space=vmem, size = 0x20000, scoped, tag = 'input window, operand 4, single buffered']
    #allocation8 [shape = 'u8[4096]{0}', space=vmem, size = 0x1000, scoped, tag = 'output window, operand 0, single buffered']
    %13 = vsyncpa [#allocation3], 0
    %14 = vsyncpa [#allocation6], 0
    %15 = vsyncpa [#allocation4], 0
    // Predicated region
    $region2: #{tpu_custom_call.1} parent=1 // pred_check
      _
    $region3: #{tpu_custom_call.1} parent=1 // pred_check_branch
      %17 = sbr.rel (0) target = $region5
    $region4: #{tpu_custom_call.1} parent=1 // pred_region
      %s19 = ssub.s32 128, 128
      %20 = vsyncadd [#allocation3], %s19
      %s22 = sshll.u32 [#allocation2], 4
      %s23 = int_to_ptr.vmem [resolvable:$true] %s22
      %25 = dma.hbm_to_vmem [thread:$0]  %s0, 128, %s23, [#allocation3]
    $region5: #{tpu_custom_call.1} parent=1 // pred_fallthru
      _
    // Predicated region
    $region6: #{tpu_custom_call.1} parent=1 // pred_check
      _
    $region7: #{tpu_custom_call.1} parent=1 // pred_check_branch
      %27 = sbr.rel (0) target = $region9
    $region8: #{tpu_custom_call.1} parent=1 // pred_region
      _
    $region9: #{tpu_custom_call.1} parent=1 // pred_fallthru
      _
    // Predicated region
    $region10: #{tpu_custom_call.1} parent=1 // pred_check
      _
    $region11: #{tpu_custom_call.1} parent=1 // pred_check_branch
      %29 = sbr.rel (0) target = $region13
    $region12: #{tpu_custom_call.1} parent=1 // pred_region
      %s31 = ssub.s32 2048, 2048
      %32 = vsyncadd [#allocation6], %s31
      %s33 = sshll.u32 [#allocation5], 4
      %s34 = int_to_ptr.vmem [resolvable:$true] %s33
      %39 = dma.hbm_to_vmem [thread:$0]  %s2, 2048, %s34, [#allocation6], 128, 128, 8
    $region13: #{tpu_custom_call.1} parent=1 // pred_fallthru
      _
    // Predicated region
    $region14: #{tpu_custom_call.1} parent=1 // pred_check
      _
    $region15: #{tpu_custom_call.1} parent=1 // pred_check_branch
      %41 = sbr.rel (0) target = $region17
    $region16: #{tpu_custom_call.1} parent=1 // pred_region
      _
    $region17: #{tpu_custom_call.1} parent=1 // pred_fallthru
      _
    // Predicated region
    $region18: #{tpu_custom_call.1} parent=1 // pred_check
      _
    $region19: #{tpu_custom_call.1} parent=1 // pred_check_branch
      %43 = sbr.rel (0) target = $region21
    $region20: #{tpu_custom_call.1} parent=1 // pred_region
      %s45 = ssub.s32 4096, 4096
      %46 = vsyncadd [#allocation6], %s45
      %s47 = sshll.u32 [#allocation7], 4
      %s48 = int_to_ptr.vmem [resolvable:$true] %s47
      %53 = dma.hbm_to_vmem [thread:$0]  %s4, 4096, %s48, [#allocation6], 256, 256, 16
    $region21: #{tpu_custom_call.1} parent=1 // pred_fallthru
      _
    // Predicated region
    $region22: #{tpu_custom_call.1} parent=1 // pred_check
      _
    $region23: #{tpu_custom_call.1} parent=1 // pred_check_branch
      %55 = sbr.rel (0) target = $region25
    $region24: #{tpu_custom_call.1} parent=1 // pred_region
      _
    $region25: #{tpu_custom_call.1} parent=1 // pred_fallthru
      _
    // Predicated region
    $region26: #{tpu_custom_call.1} parent=1 // pred_check
      _
    $region27: #{tpu_custom_call.1} parent=1 // pred_check_branch
      %57 = sbr.rel (0) target = $region29
    $region28: #{tpu_custom_call.1} parent=1 // pred_region
      %58 = dma.done [#allocation3], 128
    $region29: #{tpu_custom_call.1} parent=1 // pred_fallthru
      _
    // Predicated region
    $region30: #{tpu_custom_call.1} parent=1 // pred_check
      _
    $region31: #{tpu_custom_call.1} parent=1 // pred_check_branch
      %60 = sbr.rel (0) target = $region33
    $region32: #{tpu_custom_call.1} parent=1 // pred_region
      %61 = dma.done [#allocation6], 2048
    $region33: #{tpu_custom_call.1} parent=1 // pred_fallthru
      _
    // Predicated region
    $region34: #{tpu_custom_call.1} parent=1 // pred_check
      _
    $region35: #{tpu_custom_call.1} parent=1 // pred_check_branch
      %63 = sbr.rel (0) target = $region37
    $region36: #{tpu_custom_call.1} parent=1 // pred_region
      %64 = dma.done [#allocation6], 4096
    $region37: #{tpu_custom_call.1} parent=1 // pred_fallthru
      _
    %v65 = vld [vmem:[#allocation2] sm:$0xff]
    %v66 = vld [vmem:[%s1] sm:$0x1]
    %v67 = vsub.f32 1.0, %v66
    %v69 = vlaneseq
    %v70 = vshrl.u32 %v69, 7
    %v71 = vsub.s32 0, %v70
    %v72 = vrot.slane %v66, %v71
    %v74 = vmul.f32 %v65, %v72
    %v75 = vld [vmem:[#allocation5] sm:$0xff]
    %v76 = vld [vmem:[#allocation5 + $0x8] sm:$0xff]
    %v77 = vld [vmem:[#allocation5 + $0x10] sm:$0xff]
    %v78 = vld [vmem:[#allocation5 + $0x18] sm:$0xff]
    %v79 = vld [vmem:[#allocation5 + $0x20] sm:$0xff]
    %v80 = vld [vmem:[#allocation5 + $0x28] sm:$0xff]
    %v81 = vld [vmem:[#allocation5 + $0x30] sm:$0xff]
    %v82 = vld [vmem:[#allocation5 + $0x38] sm:$0xff]
    %v83 = vld [vmem:[#allocation5 + $0x40] sm:$0xff]
    %v84 = vld [vmem:[#allocation5 + $0x48] sm:$0xff]
    %v85 = vld [vmem:[#allocation5 + $0x50] sm:$0xff]
    %v86 = vld [vmem:[#allocation5 + $0x58] sm:$0xff]
    %v87 = vld [vmem:[#allocation5 + $0x60] sm:$0xff]
    %v88 = vld [vmem:[#allocation5 + $0x68] sm:$0xff]
    %v89 = vld [vmem:[#allocation5 + $0x70] sm:$0xff]
    %v90 = vld [vmem:[#allocation5 + $0x78] sm:$0xff]
    %v91 = vld [vmem:[%s3] sm:$0x1]
    %v93 = vlaneseq
    %v94 = vshrl.u32 %v93, 7
    %v95 = vsub.s32 0, %v94
    %v96 = vrot.slane %v91, %v95
    %98 = vmatprep.subr.mxu0 0.0
    %99 = vmatpush1.msra.mxu0 %v90
    %100 = vmatprep.subr.mxu0 0.0
    %101 = vmatpush1.msra.mxu0 %v89
    %102 = vmatprep.subr.mxu0 0.0
    %103 = vmatpush1.msra.mxu0 %v88
    %104 = vmatprep.subr.mxu0 0.0
    %105 = vmatpush1.msra.mxu0 %v87
    %106 = vmatprep.subr.mxu0 0.0
    %107 = vmatpush1.msra.mxu0 %v86
    %108 = vmatprep.subr.mxu0 0.0
    %109 = vmatpush1.msra.mxu0 %v85
    %110 = vmatprep.subr.mxu0 0.0
    %111 = vmatpush1.msra.mxu0 %v84
    %112 = vmatprep.subr.mxu0 0.0
    %113 = vmatpush1.msra.mxu0 %v83
    %114 = vmatprep.subr.mxu0 0.0
    %115 = vmatpush1.msra.mxu0 %v82
    %116 = vmatprep.subr.mxu0 0.0
    %117 = vmatpush1.msra.mxu0 %v81
    %118 = vmatprep.subr.mxu0 0.0
    %119 = vmatpush1.msra.mxu0 %v80
    %120 = vmatprep.subr.mxu0 0.0
    %121 = vmatpush1.msra.mxu0 %v79
    %122 = vmatprep.subr.mxu0 0.0
    %123 = vmatpush1.msra.mxu0 %v78
    %124 = vmatprep.subr.mxu0 0.0
    %125 = vmatpush1.msra.mxu0 %v77
    %126 = vmatprep.subr.mxu0 0.0
    %127 = vmatpush1.msra.mxu0 %v76
    %128 = vmatprep.subr.mxu0 0.0
    %129 = vmatpush1.msra.mxu0 %v75
    %130 = vmatprep.subr.mxu0 0.0
    %131 = vmatpush2.msra.mxu0 0.0
    %132 = vmatprep.subr.mxu0 0.0
    %133 = vmatpush2.msra.mxu0 0.0
    %134 = vmatprep.subr.mxu0 0.0
    %135 = vmatpush2.msra.mxu0 0.0
    %136 = vmatprep.subr.mxu0 0.0
    %137 = vmatpush2.msra.mxu0 0.0
    %138 = vmatprep.subr.mxu0 0.0
    %139 = vmatpush2.msra.mxu0 0.0
    %140 = vmatprep.subr.mxu0 0.0
    %141 = vmatpush2.msra.mxu0 0.0
    %142 = vmatprep.subr.mxu0 0.0
    %143 = vmatpush2.msra.mxu0 0.0
    %144 = vmatprep.subr.mxu0 0.0
    %145 = vmatpush2.msra.mxu0 0.0
    %146 = vmatprep.subr.mxu0 0.0
    %147 = vmatpush2.msra.mxu0 0.0
    %148 = vmatprep.subr.mxu0 0.0
    %149 = vmatpush2.msra.mxu0 0.0
    %150 = vmatprep.subr.mxu0 0.0
    %151 = vmatpush2.msra.mxu0 0.0
    %152 = vmatprep.subr.mxu0 0.0
    %153 = vmatpush2.msra.mxu0 0.0
    %154 = vmatprep.subr.mxu0 0.0
    %155 = vmatpush2.msra.mxu0 0.0
    %156 = vmatprep.subr.mxu0 0.0
    %157 = vmatpush2.msra.mxu0 0.0
    %158 = vmatprep.subr.mxu0 0.0
    %159 = vmatpush2.msra.mxu0 0.0
    %160 = vmatprep.subr.mxu0 0.0
    %161 = vmatpush2.msra.mxu0 0.0
    %162 = vmatprep.mubr.f32.mxu0 0.0
    %163 = vmatmul.mubr.f32.gmra.mxu0 %v74
    %v164 = vpop.f32.mrf.mxu0
    %v165 = vadd.f32 %v96, %v164
    %v166 = vpop.f32.mrf.mxu0
    %167 = vdwg.mxu0
    %v168 = vtanh.pop %v165
    %v169 = vld [vmem:[#allocation7] sm:$0xff]
    %v170 = vld [vmem:[#allocation7 + $0x8] sm:$0xff]
    %v171 = vld [vmem:[#allocation7 + $0x10] sm:$0xff]
    %v172 = vld [vmem:[#allocation7 + $0x18] sm:$0xff]
    %v173 = vld [vmem:[#allocation7 + $0x20] sm:$0xff]
    %v174 = vld [vmem:[#allocation7 + $0x28] sm:$0xff]
    %v175 = vld [vmem:[#allocation7 + $0x30] sm:$0xff]
    %v176 = vld [vmem:[#allocation7 + $0x38] sm:$0xff]
    %v177 = vld [vmem:[#allocation7 + $0x40] sm:$0xff]
    %v178 = vld [vmem:[#allocation7 + $0x48] sm:$0xff]
    %v179 = vld [vmem:[#allocation7 + $0x50] sm:$0xff]
    %v180 = vld [vmem:[#allocation7 + $0x58] sm:$0xff]
    %v181 = vld [vmem:[#allocation7 + $0x60] sm:$0xff]
    %v182 = vld [vmem:[#allocation7 + $0x68] sm:$0xff]
    %v183 = vld [vmem:[#allocation7 + $0x70] sm:$0xff]
    %v184 = vld [vmem:[#allocation7 + $0x78] sm:$0xff]
    %v185 = vld [vmem:[#allocation7 + $0x80] sm:$0xff]
    %v186 = vld [vmem:[#allocation7 + $0x88] sm:$0xff]
    %v187 = vld [vmem:[#allocation7 + $0x90] sm:$0xff]
    %v188 = vld [vmem:[#allocation7 + $0x98] sm:$0xff]
    %v189 = vld [vmem:[#allocation7 + $0xa0] sm:$0xff]
    %v190 = vld [vmem:[#allocation7 + $0xa8] sm:$0xff]
    %v191 = vld [vmem:[#allocation7 + $0xb0] sm:$0xff]
    %v192 = vld [vmem:[#allocation7 + $0xb8] sm:$0xff]
    %v193 = vld [vmem:[#allocation7 + $0xc0] sm:$0xff]
    %v194 = vld [vmem:[#allocation7 + $0xc8] sm:$0xff]
    %v195 = vld [vmem:[#allocation7 + $0xd0] sm:$0xff]
    %v196 = vld [vmem:[#allocation7 + $0xd8] sm:$0xff]
    %v197 = vld [vmem:[#allocation7 + $0xe0] sm:$0xff]
    %v198 = vld [vmem:[#allocation7 + $0xe8] sm:$0xff]
    %v199 = vld [vmem:[#allocation7 + $0xf0] sm:$0xff]
    %v200 = vld [vmem:[#allocation7 + $0xf8] sm:$0xff]
    %v201 = vld [vmem:[%s5] sm:$0x3]
    %v203 = vlaneseq
    %v204 = vshrl.u32 %v203, 7
    %v205 = vsub.s32 0, %v204
    %v206 = vrot.slane %v201, %v205
    %v207 = vlaneseq
    %v208 = vshrl.u32 %v207, 7
    %v209 = vsub.s32 1, %v208
    %v210 = vrot.slane %v201, %v209
    %213 = vmatprep.subr.mxu0 %v200
    %214 = vmatpush1.msra.mxu0 %v199
    %215 = vmatprep.subr.mxu0 %v198
    %216 = vmatpush1.msra.mxu0 %v197
    %217 = vmatprep.subr.mxu0 %v196
    %218 = vmatpush1.msra.mxu0 %v195
    %219 = vmatprep.subr.mxu0 %v194
    %220 = vmatpush1.msra.mxu0 %v193
    %221 = vmatprep.subr.mxu0 %v192
    %222 = vmatpush1.msra.mxu0 %v191
    %223 = vmatprep.subr.mxu0 %v190
    %224 = vmatpush1.msra.mxu0 %v189
    %225 = vmatprep.subr.mxu0 %v188
    %226 = vmatpush1.msra.mxu0 %v187
    %227 = vmatprep.subr.mxu0 %v186
    %228 = vmatpush1.msra.mxu0 %v185
    %229 = vmatprep.subr.mxu0 %v184
    %230 = vmatpush1.msra.mxu0 %v183
    %231 = vmatprep.subr.mxu0 %v182
    %232 = vmatpush1.msra.mxu0 %v181
    %233 = vmatprep.subr.mxu0 %v180
    %234 = vmatpush1.msra.mxu0 %v179
    %235 = vmatprep.subr.mxu0 %v178
    %236 = vmatpush1.msra.mxu0 %v177
    %237 = vmatprep.subr.mxu0 %v176
    %238 = vmatpush1.msra.mxu0 %v175
    %239 = vmatprep.subr.mxu0 %v174
    %240 = vmatpush1.msra.mxu0 %v173
    %241 = vmatprep.subr.mxu0 %v172
    %242 = vmatpush1.msra.mxu0 %v171
    %243 = vmatprep.subr.mxu0 %v170
    %244 = vmatpush1.msra.mxu0 %v169
    %245 = vmatprep.subr.mxu0 0.0
    %246 = vmatpush2.msra.mxu0 0.0
    %247 = vmatprep.subr.mxu0 0.0
    %248 = vmatpush2.msra.mxu0 0.0
    %249 = vmatprep.subr.mxu0 0.0
    %250 = vmatpush2.msra.mxu0 0.0
    %251 = vmatprep.subr.mxu0 0.0
    %252 = vmatpush2.msra.mxu0 0.0
    %253 = vmatprep.subr.mxu0 0.0
    %254 = vmatpush2.msra.mxu0 0.0
    %255 = vmatprep.subr.mxu0 0.0
    %256 = vmatpush2.msra.mxu0 0.0
    %257 = vmatprep.subr.mxu0 0.0
    %258 = vmatpush2.msra.mxu0 0.0
    %259 = vmatprep.subr.mxu0 0.0
    %260 = vmatpush2.msra.mxu0 0.0
    %261 = vmatprep.subr.mxu0 0.0
    %262 = vmatpush2.msra.mxu0 0.0
    %263 = vmatprep.subr.mxu0 0.0
    %264 = vmatpush2.msra.mxu0 0.0
    %265 = vmatprep.subr.mxu0 0.0
    %266 = vmatpush2.msra.mxu0 0.0
    %267 = vmatprep.subr.mxu0 0.0
    %268 = vmatpush2.msra.mxu0 0.0
    %269 = vmatprep.subr.mxu0 0.0
    %270 = vmatpush2.msra.mxu0 0.0
    %271 = vmatprep.subr.mxu0 0.0
    %272 = vmatpush2.msra.mxu0 0.0
    %273 = vmatprep.subr.mxu0 0.0
    %274 = vmatpush2.msra.mxu0 0.0
    %275 = vmatprep.subr.mxu0 0.0
    %276 = vmatpush2.msra.mxu0 0.0
    %277 = vmatprep.mubr.f32.mxu0 0.0
    %278 = vmatmul.mubr.f32.gmra.mxu0 %v168
    %v279 = vpop.f32.mrf.mxu0
    %v280 = vadd.f32 %v206, %v279
    %v281 = vpop.f32.mrf.mxu0
    %v282 = vadd.f32 %v210, %v281
    %283 = vdwg.mxu0
    %v284 = vtanh.pop %v280
    %v286 = vlaneseq
    %v287 = vshrl.u32 %v286, 7
    %v288 = vsub.s32 0, %v287
    %v289 = vrot.slane %v67, %v288
    %v291 = vmul.f32 %v284, %v289
    %v292 = vmul.f32 %v282, %v289
    %v293 = vmul.f32 %v291, 1.442695
    %v294 = vpow.pop %v293
    %v295 = vmul.f32 %v65, %v294
    %v296 = vadd.f32 %v295, %v292
    %297 = vst [vmem:[#allocation8] sm:$0xff] %v296
    %298 = vadd.xlane.f32.xlu0 %v291
    %v299 = vpop.xlane.xlu0 %298
    %vm300 = vcmask 7168
    %301 = vst.msk [vmem:[%s7] sm:$0xff] %vm300, %v299
    // Predicated region
    $region38: #{tpu_custom_call.1} parent=1 // pred_check
      _
    $region39: #{tpu_custom_call.1} parent=1 // pred_check_branch
      %303 = sbr.rel (0) target = $region41
    $region40: #{tpu_custom_call.1} parent=1 // pred_region
      %s305 = ssub.s32 128, 128
      %306 = vsyncadd [#allocation4], %s305
      %s308 = sshll.u32 [#allocation8], 4
      %s309 = int_to_ptr.vmem [resolvable:$true] %s308
      %311 = dma.vmem_to_hbm [thread:$0]  %s309, 128, %s6, [#allocation4]
    $region41: #{tpu_custom_call.1} parent=1 // pred_fallthru
      _
    // Predicated region
    $region42: #{tpu_custom_call.1} parent=1 // pred_check
      _
    $region43: #{tpu_custom_call.1} parent=1 // pred_check_branch
      %313 = sbr.rel (0) target = $region45
    $region44: #{tpu_custom_call.1} parent=1 // pred_region
      _
    $region45: #{tpu_custom_call.1} parent=1 // pred_fallthru
      _
    // Predicated region
    $region46: #{tpu_custom_call.1} parent=1 // pred_check
      _
    $region47: #{tpu_custom_call.1} parent=1 // pred_check_branch
      %315 = sbr.rel (0) target = $region49
    $region48: #{tpu_custom_call.1} parent=1 // pred_region
      %316 = dma.done [#allocation4], 128
    $region49: #{tpu_custom_call.1} parent=1 // pred_fallthru
      _
    // Predicated region
    $region50: #{tpu_custom_call.1} parent=1 // pred_check
      _
    $region51: #{tpu_custom_call.1} parent=1 // pred_check_branch
      %318 = sbr.rel (0) target = $region53
    $region52: #{tpu_custom_call.1} parent=1 // pred_region
      _
    $region53: #{tpu_custom_call.1} parent=1 // pred_fallthru
      _
    %319 = vsyncpa [#allocation3], 1
    %320 = vsyncpa [#allocation6], 1
    %321 = vsyncpa [#allocation4], 1

</llo_original>
